<compile_context>
chip_gen: v6e
topology: v6e:2x2x1
jax: 0.10.0
libtpu: 0.0.40
codegen_flags: <defaults>
</compile_context>

<pallas_src>
import jax
import jax.numpy as jnp
from jax.experimental import pallas as pl
from jax.experimental.pallas import tpu as pltpu


def encoder_rnn_kernel(x_ref, hc_ref, w1t_ref, b1_ref, wg_ref, bg_ref, hc_out_ref):
    H = hc_ref.shape[-1] // 2
    I = x_ref.shape[-1]

    x = x_ref[...]
    hc = hc_ref[...]
    h = hc[:, :H]
    c = hc[:, H:]

    # embedded = relu(linear1(x)) -- K = input_size is tiny (2), so do it on the VPU
    # as broadcast multiply-adds instead of an MXU pass.
    emb = b1_ref[...]                                   # (1, E), broadcasts to (B, E)
    for k in range(I):                                  # static unroll (I == 2)
        emb = emb + x[:, k:k + 1] * w1t_ref[k:k + 1, :]
    emb = jnp.maximum(emb, 0.0)

    # Single fused gate matmul: [emb, h] @ [W_ih^T ; W_hh^T] + (b_ih + b_hh)
    stacked = jnp.concatenate([emb, h], axis=-1)        # (B, E+H)
    gates = (jnp.dot(stacked, wg_ref[...], preferred_element_type=jnp.float32)
             + bg_ref[...])                             # (B, 4H)

    def sig(z):
        # sigmoid(z) == 0.5 * tanh(0.5 * z) + 0.5 : one EUP op instead of exp + recip.
        return 0.5 * jnp.tanh(0.5 * z) + 0.5

    i_g = sig(gates[:, 0 * H:1 * H])
    f_g = sig(gates[:, 1 * H:2 * H])
    g_g = jnp.tanh(gates[:, 2 * H:3 * H])
    o_g = sig(gates[:, 3 * H:4 * H])

    c_new = f_g * c + i_g * g_g
    h_new = o_g * jnp.tanh(c_new)

    # One wider (B, 2H) store instead of two H-wide masked stores.
    hc_out_ref[...] = jnp.concatenate([h_new, c_new], axis=-1)


@jax.jit
def encoder_rnn_forward(x, hidden, params):
    """Pallas wrapper mirroring EncoderRNN.forward(x, hidden) -> (h, c)."""
    h0, c0 = hidden
    B = x.shape[0]
    H = h0.shape[-1]

    # Fuse the recurrent state into one lane-denser slab (also enables in-place aliasing).
    hc = jnp.concatenate([h0, c0], axis=-1)             # (B, 2H)

    vmem_spec = pl.BlockSpec(memory_space=pltpu.MemorySpace.VMEM)

    hc_new = pl.pallas_call(
        encoder_rnn_kernel,
        out_shape=jax.ShapeDtypeStruct((B, 2 * H), jnp.float32),
        in_specs=[vmem_spec] * 6,
        out_specs=vmem_spec,
        input_output_aliases={1: 0},                    # hc (input 1) -> hc_new (output 0)
    )(x, hc, params["w1_t"], params["b1"], params["w_gate"], params["b_gate"])

    return hc_new[:, :H], hc_new[:, H:]


def init_params(key, input_size=2, embedding_size=8, hidden_size=16):
    """Deterministic parameter init (PyTorch-style uniform ranges) + fused kernel forms."""
    ks = jax.random.split(key, 6)
    lin_bound = 1.0 / jnp.sqrt(float(input_size))
    lstm_bound = 1.0 / jnp.sqrt(float(hidden_size))

    w1 = jax.random.uniform(ks[0], (embedding_size, input_size),
                            minval=-lin_bound, maxval=lin_bound, dtype=jnp.float32)
    b1 = jax.random.uniform(ks[1], (embedding_size,),
                            minval=-lin_bound, maxval=lin_bound, dtype=jnp.float32)
    wih = jax.random.uniform(ks[2], (4 * hidden_size, embedding_size),
                             minval=-lstm_bound, maxval=lstm_bound, dtype=jnp.float32)
    whh = jax.random.uniform(ks[3], (4 * hidden_size, hidden_size),
                             minval=-lstm_bound, maxval=lstm_bound, dtype=jnp.float32)
    bih = jax.random.uniform(ks[4], (4 * hidden_size,),
                             minval=-lstm_bound, maxval=lstm_bound, dtype=jnp.float32)
    bhh = jax.random.uniform(ks[5], (4 * hidden_size,),
                             minval=-lstm_bound, maxval=lstm_bound, dtype=jnp.float32)

    w1_t = w1.T                                          # (input_size, embedding_size)
    wih_t = wih.T                                        # (embedding_size, 4*hidden_size)
    whh_t = whh.T                                        # (hidden_size,   4*hidden_size)

    return {
        # raw (PyTorch-equivalent) parameters, used by the pure-JAX reference
        "w1_t": w1_t,
        "b1": b1.reshape(1, -1),
        "wih_t": wih_t,
        "whh_t": whh_t,
        "bih": bih.reshape(1, -1),
        "bhh": bhh.reshape(1, -1),
        # fused, kernel-friendly forms (computed ONCE at init)
        "w_gate": jnp.concatenate([wih_t, whh_t], axis=0),   # (E+H, 4H)
        "b_gate": (bih + bhh).reshape(1, -1),                # (1, 4H)
    }


def encoder_rnn_reference(x, hidden, params):
    """Pure-JAX reference of the PyTorch forward pass (unfused weights, jax.nn.sigmoid)."""
    h0, c0 = hidden
    emb = jnp.maximum(x @ params["w1_t"] + params["b1"], 0.0)
    gates = emb @ params["wih_t"] + h0 @ params["whh_t"] + params["bih"] + params["bhh"]
    H = h0.shape[-1]
    i_g = jax.nn.sigmoid(gates[:, 0 * H:1 * H])
    f_g = jax.nn.sigmoid(gates[:, 1 * H:2 * H])
    g_g = jnp.tanh(gates[:, 2 * H:3 * H])
    o_g = jax.nn.sigmoid(gates[:, 3 * H:4 * H])
    c_new = f_g * c0 + i_g * g_g
    h_new = o_g * jnp.tanh(c_new)
    return h_new, c_new


if __name__ == "__main__":
    input_size, embedding_size, hidden_size = 2, 8, 16
    batch = 8

    key = jax.random.PRNGKey(0)
    k_params, k_x, k_h, k_c = jax.random.split(key, 4)

    params = init_params(k_params, input_size, embedding_size, hidden_size)
    x = jax.random.normal(k_x, (batch, input_size), dtype=jnp.float32)
    h0 = jax.random.normal(k_h, (batch, hidden_size), dtype=jnp.float32)
    c0 = jax.random.normal(k_c, (batch, hidden_size), dtype=jnp.float32)

    h_new, c_new = encoder_rnn_forward(x, (h0, c0), params)
    jax.block_until_ready((h_new, c_new))

    h_ref, c_ref = encoder_rnn_reference(x, (h0, c0), params)
    assert jnp.allclose(h_new, h_ref, atol=2e-5, rtol=1e-4), "h mismatch vs reference"
    assert jnp.allclose(c_new, c_ref, atol=2e-5, rtol=1e-4), "c mismatch vs reference"

    print("KERNEL_OK")
</pallas_src>

<mosaic_0001>
module attributes {stable_mosaic.version = 11 : i64} {
  func.func @encoder_rnn_kernel(%arg0: memref<8x2xf32, #tpu.memory_space<vmem>>, %arg1: memref<8x32xf32, #tpu.memory_space<vmem>>, %arg2: memref<2x8xf32, #tpu.memory_space<vmem>>, %arg3: memref<1x8xf32, #tpu.memory_space<vmem>>, %arg4: memref<24x64xf32, #tpu.memory_space<vmem>>, %arg5: memref<1x64xf32, #tpu.memory_space<vmem>>, %arg6: memref<8x32xf32, #tpu.memory_space<vmem>>) attributes {dimension_semantics = [], scalar_prefetch = 0 : i64, scratch_operands = 0 : i64, tpu.core_type = #tpu.core_type<tc>} {
    %c0 = arith.constant 0 : index
    %c0_0 = arith.constant 0 : index
    %0 = vector.load %arg0[%c0, %c0_0] : memref<8x2xf32, #tpu.memory_space<vmem>>, vector<8x2xf32>
    %c0_1 = arith.constant 0 : index
    %c0_2 = arith.constant 0 : index
    %1 = vector.load %arg1[%c0_1, %c0_2] : memref<8x32xf32, #tpu.memory_space<vmem>>, vector<8x32xf32>
    %2 = vector.extract_strided_slice %1 {offsets = [0, 0], sizes = [8, 16], strides = [1, 1]} : vector<8x32xf32> to vector<8x16xf32>
    %3 = vector.extract_strided_slice %1 {offsets = [0, 16], sizes = [8, 16], strides = [1, 1]} : vector<8x32xf32> to vector<8x16xf32>
    %c0_3 = arith.constant 0 : index
    %c0_4 = arith.constant 0 : index
    %4 = vector.load %arg3[%c0_3, %c0_4] : memref<1x8xf32, #tpu.memory_space<vmem>>, vector<1x8xf32>
    %5 = vector.extract_strided_slice %0 {offsets = [0, 0], sizes = [8, 1], strides = [1, 1]} : vector<8x2xf32> to vector<8x1xf32>
    %c0_5 = arith.constant 0 : index
    %c0_6 = arith.constant 0 : index
    %6 = vector.load %arg2[%c0_5, %c0_6] : memref<2x8xf32, #tpu.memory_space<vmem>>, vector<1x8xf32>
    %7 = vector.broadcast %5 : vector<8x1xf32> to vector<8x8xf32>
    %8 = vector.broadcast %6 : vector<1x8xf32> to vector<8x8xf32>
    %9 = arith.mulf %7, %8 : vector<8x8xf32>
    %10 = vector.broadcast %4 : vector<1x8xf32> to vector<8x8xf32>
    %11 = arith.addf %10, %9 : vector<8x8xf32>
    %12 = vector.extract_strided_slice %0 {offsets = [0, 1], sizes = [8, 1], strides = [1, 1]} : vector<8x2xf32> to vector<8x1xf32>
    %c1 = arith.constant 1 : index
    %c0_7 = arith.constant 0 : index
    %13 = vector.load %arg2[%c1, %c0_7] : memref<2x8xf32, #tpu.memory_space<vmem>>, vector<1x8xf32>
    %14 = vector.broadcast %12 : vector<8x1xf32> to vector<8x8xf32>
    %15 = vector.broadcast %13 : vector<1x8xf32> to vector<8x8xf32>
    %16 = arith.mulf %14, %15 : vector<8x8xf32>
    %17 = arith.addf %11, %16 : vector<8x8xf32>
    %cst = arith.constant 0.000000e+00 : f32
    %18 = vector.broadcast %cst : f32 to vector<8x8xf32>
    %19 = arith.maximumf %17, %18 : vector<8x8xf32>
    %20 = tpu.concatenate %19, %2 in 1 : vector<8x8xf32>, vector<8x16xf32> -> vector<8x24xf32>
    %c0_8 = arith.constant 0 : index
    %c0_9 = arith.constant 0 : index
    %21 = vector.load %arg4[%c0_8, %c0_9] : memref<24x64xf32, #tpu.memory_space<vmem>>, vector<24x64xf32>
    %cst_10 = arith.constant dense<0.000000e+00> : vector<8x64xf32>
    %22 = tpu.matmul %20, %21, %cst_10 {dimension_numbers = #tpu.dot_dimension_numbers<[1], [0], [0], [1], [0, 0, 1, 1], [], []>} : vector<8x24xf32>, vector<24x64xf32>, vector<8x64xf32> -> vector<8x64xf32>
    %c0_11 = arith.constant 0 : index
    %c0_12 = arith.constant 0 : index
    %23 = vector.load %arg5[%c0_11, %c0_12] : memref<1x64xf32, #tpu.memory_space<vmem>>, vector<1x64xf32>
    %24 = vector.broadcast %23 : vector<1x64xf32> to vector<8x64xf32>
    %25 = arith.addf %22, %24 : vector<8x64xf32>
    %26 = vector.extract_strided_slice %25 {offsets = [0, 0], sizes = [8, 16], strides = [1, 1]} : vector<8x64xf32> to vector<8x16xf32>
    %cst_13 = arith.constant 5.000000e-01 : f32
    %27 = vector.broadcast %cst_13 : f32 to vector<8x16xf32>
    %28 = arith.mulf %27, %26 : vector<8x16xf32>
    %29 = math.tanh %28 : vector<8x16xf32>
    %cst_14 = arith.constant 5.000000e-01 : f32
    %30 = vector.broadcast %cst_14 : f32 to vector<8x16xf32>
    %31 = arith.mulf %30, %29 : vector<8x16xf32>
    %cst_15 = arith.constant 5.000000e-01 : f32
    %32 = vector.broadcast %cst_15 : f32 to vector<8x16xf32>
    %33 = arith.addf %31, %32 : vector<8x16xf32>
    %34 = vector.extract_strided_slice %25 {offsets = [0, 16], sizes = [8, 16], strides = [1, 1]} : vector<8x64xf32> to vector<8x16xf32>
    %cst_16 = arith.constant 5.000000e-01 : f32
    %35 = vector.broadcast %cst_16 : f32 to vector<8x16xf32>
    %36 = arith.mulf %35, %34 : vector<8x16xf32>
    %37 = math.tanh %36 : vector<8x16xf32>
    %cst_17 = arith.constant 5.000000e-01 : f32
    %38 = vector.broadcast %cst_17 : f32 to vector<8x16xf32>
    %39 = arith.mulf %38, %37 : vector<8x16xf32>
    %cst_18 = arith.constant 5.000000e-01 : f32
    %40 = vector.broadcast %cst_18 : f32 to vector<8x16xf32>
    %41 = arith.addf %39, %40 : vector<8x16xf32>
    %42 = vector.extract_strided_slice %25 {offsets = [0, 32], sizes = [8, 16], strides = [1, 1]} : vector<8x64xf32> to vector<8x16xf32>
    %43 = math.tanh %42 : vector<8x16xf32>
    %44 = vector.extract_strided_slice %25 {offsets = [0, 48], sizes = [8, 16], strides = [1, 1]} : vector<8x64xf32> to vector<8x16xf32>
    %cst_19 = arith.constant 5.000000e-01 : f32
    %45 = vector.broadcast %cst_19 : f32 to vector<8x16xf32>
    %46 = arith.mulf %45, %44 : vector<8x16xf32>
    %47 = math.tanh %46 : vector<8x16xf32>
    %cst_20 = arith.constant 5.000000e-01 : f32
    %48 = vector.broadcast %cst_20 : f32 to vector<8x16xf32>
    %49 = arith.mulf %48, %47 : vector<8x16xf32>
    %cst_21 = arith.constant 5.000000e-01 : f32
    %50 = vector.broadcast %cst_21 : f32 to vector<8x16xf32>
    %51 = arith.addf %49, %50 : vector<8x16xf32>
    %52 = arith.mulf %41, %3 : vector<8x16xf32>
    %53 = arith.mulf %33, %43 : vector<8x16xf32>
    %54 = arith.addf %52, %53 : vector<8x16xf32>
    %55 = math.tanh %54 : vector<8x16xf32>
    %56 = arith.mulf %51, %55 : vector<8x16xf32>
    %57 = tpu.concatenate %56, %54 in 1 : vector<8x16xf32>, vector<8x16xf32> -> vector<8x32xf32>
    %c0_22 = arith.constant 0 : index
    %c0_23 = arith.constant 0 : index
    %58 = vector.load %arg6[%c0_22, %c0_23] : memref<8x32xf32, #tpu.memory_space<vmem>>, vector<8x32xf32>
    tpu.vector_store %arg6[%c0_22, %c0_23], %57 {strides = array<i32>} : memref<8x32xf32, #tpu.memory_space<vmem>>, vector<8x32xf32>,
    return
  }
}

</mosaic_0001>

<llo_original>
// kernel: encoder_rnn_forward.1
$region0: #{encoder_rnn_forward.1}
  #allocation0 [shape = 'u32[]', space=smem, size = 0x4, offset = 0x4, fixed_abs, tag = 'smem constant byte address 0x4 - core index']
  #allocation1 [shape = 'u32[144,128]{1,0:T(1,128)}', space=vmem, size = 0x12000, scoped, tag = 'internal scratch']
  %s0 = inlined_call_operand.vmem [shape: f32[8,2], index: 0, kind: input, shape index: {}]
  %s1 = inlined_call_operand.vmem [shape: f32[8,32], index: 1, kind: input, shape index: {}, may-alias: {1,6}]
  %s2 = inlined_call_operand.vmem [shape: f32[2,8], index: 2, kind: input, shape index: {}]
  %s3 = inlined_call_operand.vmem [shape: f32[1,8], index: 3, kind: input, shape index: {}]
  %s4 = inlined_call_operand.vmem [shape: f32[24,64], index: 4, kind: input, shape index: {}]
  %s5 = inlined_call_operand.vmem [shape: f32[1,64], index: 5, kind: input, shape index: {}]
  %s6 = inlined_call_operand.vmem [shape: f32[8,32], index: 6, kind: output, shape index: {}, may-alias: {1,6}]
  %s7 = sld [smem:[#allocation0]]
  $region34: #{encoder_rnn_forward.1} parent=0
    _
  %s9 = ssub.s32 1, %s7
  %s10 = scalar_select 0, %s9, %s7
  // Predicated region
  $region2: #{encoder_rnn_forward.1} parent=0 // pred_check
    _
  $region3: #{encoder_rnn_forward.1} parent=0 // pred_check_branch
    %12 = sbr.rel (0) target = $region5
  $region4: #{encoder_rnn_forward.1} parent=0 // pred_region
    _
  $region5: #{encoder_rnn_forward.1} parent=0 // pred_fallthru
    _
  // Predicated region
  $region6: #{encoder_rnn_forward.1} parent=0 // pred_check
    _
  $region7: #{encoder_rnn_forward.1} parent=0 // pred_check_branch
    %14 = sbr.rel (0) target = $region9
  $region8: #{encoder_rnn_forward.1} parent=0 // pred_region
    _
  $region9: #{encoder_rnn_forward.1} parent=0 // pred_fallthru
    _
  // Predicated region
  $region10: #{encoder_rnn_forward.1} parent=0 // pred_check
    _
  $region11: #{encoder_rnn_forward.1} parent=0 // pred_check_branch
    %16 = sbr.rel (0) target = $region13
  $region12: #{encoder_rnn_forward.1} parent=0 // pred_region
    _
  $region13: #{encoder_rnn_forward.1} parent=0 // pred_fallthru
    _
  // Predicated region
  $region14: #{encoder_rnn_forward.1} parent=0 // pred_check
    _
  $region15: #{encoder_rnn_forward.1} parent=0 // pred_check_branch
    %18 = sbr.rel (0) target = $region17
  $region16: #{encoder_rnn_forward.1} parent=0 // pred_region
    _
  $region17: #{encoder_rnn_forward.1} parent=0 // pred_fallthru
    _
  // Predicated region
  $region18: #{encoder_rnn_forward.1} parent=0 // pred_check
    _
  $region19: #{encoder_rnn_forward.1} parent=0 // pred_check_branch
    %20 = sbr.rel (0) target = $region21
  $region20: #{encoder_rnn_forward.1} parent=0 // pred_region
    _
  $region21: #{encoder_rnn_forward.1} parent=0 // pred_fallthru
    _
  // Predicated region
  $region22: #{encoder_rnn_forward.1} parent=0 // pred_check
    _
  $region23: #{encoder_rnn_forward.1} parent=0 // pred_check_branch
    %22 = sbr.rel (0) target = $region25
  $region24: #{encoder_rnn_forward.1} parent=0 // pred_region
    _
  $region25: #{encoder_rnn_forward.1} parent=0 // pred_fallthru
    _
  %v23 = vld [vmem:[%s0] sm:$0xff]
  %v24 = vld [vmem:[%s1] sm:$0xff]
  %v25 = vld [vmem:[%s3] sm:$0x1]
  %v26 = vld [vmem:[%s2] sm:$0x1]
  %28 = vset.pattern.permute.xlu0 0
  %29 = vperm.xlu0 %28, %v23
  %v30 = vpop.permute.xlu0 %29
  %v32 = vlaneseq
  %v33 = vshrl.u32 %v32, 7
  %v34 = vsub.s32 0, %v33
  %v35 = vrot.slane %v26, %v34
  %v36 = vmul.f32 %v30, %v35
  %v38 = vlaneseq
  %v39 = vshrl.u32 %v38, 7
  %v40 = vsub.s32 0, %v39
  %v41 = vrot.slane %v25, %v40
  %v43 = vadd.f32 %v41, %v36
  %v44 = vld [vmem:[%s2 + $0x1] sm:$0x1]
  %45 = vset.pattern.permute.xlu0 1
  %46 = vperm.xlu0 %45, %v23
  %v47 = vpop.permute.xlu0 %46
  %v49 = vlaneseq
  %v50 = vshrl.u32 %v49, 7
  %v51 = vsub.s32 0, %v50
  %v52 = vrot.slane %v44, %v51
  %v53 = vmul.f32 %v47, %v52
  %v54 = vadd.f32 %v43, %v53
  %v55 = vmax.f32 %v54, 0.0
  %57 = vrot.lane.b32.xlu0 %v24, 8
  %v58 = vpop.permute.xlu0 %57
  %vm60 = vcmask 64512
  %v61 = vsel %vm60, %v55, %v58
  %v62 = vld [vmem:[%s4] sm:$0xff]
  %v63 = vld [vmem:[%s4 + $0x8] sm:$0xff]
  %v64 = vld [vmem:[%s4 + $0x10] sm:$0xff]
  %v65 = vld [vmem:[%s5] sm:$0x1]
  %v67 = vlaneseq
  %v68 = vshrl.u32 %v67, 7
  %v69 = vsub.s32 0, %v68
  %v70 = vrot.slane %v65, %v69
  %vm72 = vcmask 195584
  %v74 = vsel %vm72, %v61, 0
  %76 = vmatprep.subr.mxu0 0.0
  %77 = vmatpush1.msra.mxu0 0.0
  %78 = vmatprep.subr.mxu0 0.0
  %79 = vmatpush1.msra.mxu0 0.0
  %80 = vmatprep.subr.mxu0 0.0
  %81 = vmatpush1.msra.mxu0 0.0
  %82 = vmatprep.subr.mxu0 0.0
  %83 = vmatpush1.msra.mxu0 0.0
  %84 = vmatprep.subr.mxu0 0.0
  %85 = vmatpush1.msra.mxu0 0.0
  %86 = vmatprep.subr.mxu0 0.0
  %87 = vmatpush1.msra.mxu0 0.0
  %88 = vmatprep.subr.mxu0 0.0
  %89 = vmatpush1.msra.mxu0 0.0
  %90 = vmatprep.subr.mxu0 0.0
  %91 = vmatpush1.msra.mxu0 0.0
  %92 = vmatprep.subr.mxu0 0.0
  %93 = vmatpush1.msra.mxu0 0.0
  %94 = vmatprep.subr.mxu0 0.0
  %95 = vmatpush1.msra.mxu0 0.0
  %96 = vmatprep.subr.mxu0 0.0
  %97 = vmatpush1.msra.mxu0 0.0
  %98 = vmatprep.subr.mxu0 0.0
  %99 = vmatpush1.msra.mxu0 0.0
  %100 = vmatprep.subr.mxu0 0.0
  %101 = vmatpush1.msra.mxu0 0.0
  %102 = vmatprep.subr.mxu0 0.0
  %103 = vmatpush1.msra.mxu0 %v64
  %104 = vmatprep.subr.mxu0 0.0
  %105 = vmatpush1.msra.mxu0 %v63
  %106 = vmatprep.subr.mxu0 0.0
  %107 = vmatpush1.msra.mxu0 %v62
  %108 = vmatprep.subr.mxu0 0.0
  %109 = vmatpush2.msra.mxu0 0.0
  %110 = vmatprep.subr.mxu0 0.0
  %111 = vmatpush2.msra.mxu0 0.0
  %112 = vmatprep.subr.mxu0 0.0
  %113 = vmatpush2.msra.mxu0 0.0
  %114 = vmatprep.subr.mxu0 0.0
  %115 = vmatpush2.msra.mxu0 0.0
  %116 = vmatprep.subr.mxu0 0.0
  %117 = vmatpush2.msra.mxu0 0.0
  %118 = vmatprep.subr.mxu0 0.0
  %119 = vmatpush2.msra.mxu0 0.0
  %120 = vmatprep.subr.mxu0 0.0
  %121 = vmatpush2.msra.mxu0 0.0
  %122 = vmatprep.subr.mxu0 0.0
  %123 = vmatpush2.msra.mxu0 0.0
  %124 = vmatprep.subr.mxu0 0.0
  %125 = vmatpush2.msra.mxu0 0.0
  %126 = vmatprep.subr.mxu0 0.0
  %127 = vmatpush2.msra.mxu0 0.0
  %128 = vmatprep.subr.mxu0 0.0
  %129 = vmatpush2.msra.mxu0 0.0
  %130 = vmatprep.subr.mxu0 0.0
  %131 = vmatpush2.msra.mxu0 0.0
  %132 = vmatprep.subr.mxu0 0.0
  %133 = vmatpush2.msra.mxu0 0.0
  %134 = vmatprep.subr.mxu0 0.0
  %135 = vmatpush2.msra.mxu0 0.0
  %136 = vmatprep.subr.mxu0 0.0
  %137 = vmatpush2.msra.mxu0 0.0
  %138 = vmatprep.subr.mxu0 0.0
  %139 = vmatpush2.msra.mxu0 0.0
  %140 = vmatprep.mubr.f32.mxu0 0.0
  %141 = vmatmul.mubr.f32.gmra.mxu0 %v74
  %v142 = vpop.f32.mrf.mxu0
  %v143 = vadd.f32 %v70, %v142
  %v144 = vpop.f32.mrf.mxu0
  %145 = vdwg.mxu0
  %v146 = vmul.f32 %v143, 0.5
  %v147 = vtanh.pop %v146
  %v148 = vmul.f32 %v147, 0.5
  %v149 = vadd.f32 %v148, 0.5
  %v150 = vtanh.pop %v143
  %v151 = vmul.f32 %v149, %v24
  %153 = vrot.lane.b32.xlu0 %v150, 96
  %v154 = vpop.permute.xlu0 %153
  %v156 = vmul.f32 %v149, %v154
  %158 = vrot.lane.b32.xlu0 %v156, 16
  %v159 = vpop.permute.xlu0 %158
  %v161 = vadd.f32 %v151, %v159
  %v162 = vtanh.pop %v161
  %164 = vrot.lane.b32.xlu0 %v162, 32
  %v165 = vpop.permute.xlu0 %164
  %v167 = vmul.f32 %v149, %v165
  %169 = vrot.lane.b32.xlu0 %v167, 80
  %v170 = vpop.permute.xlu0 %169
  %vm172 = vcmask 130048
  %v173 = vsel %vm172, %v170, %v161
  %vm174 = vcmask 261120
  %175 = vst.msk [vmem:[%s6] sm:$0xff] %vm174, %v173
  // Predicated region
  $region26: #{encoder_rnn_forward.1} parent=0 // pred_check
    _
  $region27: #{encoder_rnn_forward.1} parent=0 // pred_check_branch
    %177 = sbr.rel (0) target = $region29
  $region28: #{encoder_rnn_forward.1} parent=0 // pred_region
    _
  $region29: #{encoder_rnn_forward.1} parent=0 // pred_fallthru
    _
  // Predicated region
  $region30: #{encoder_rnn_forward.1} parent=0 // pred_check
    _
  $region31: #{encoder_rnn_forward.1} parent=0 // pred_check_branch
    %179 = sbr.rel (0) target = $region33
  $region32: #{encoder_rnn_forward.1} parent=0 // pred_region
    _
  $region33: #{encoder_rnn_forward.1} parent=0 // pred_fallthru
    _

</llo_original>
